<compile_context>
chip_gen: v5e
topology: v5e:2x2
jax: 0.10.0
libtpu: 0.0.40
codegen_flags: <defaults>
</compile_context>

<pallas_src>
import jax
import jax.numpy as jnp
from jax.experimental import pallas as pl
from jax.experimental.pallas import tpu as pltpu

LATENT = 10
IN_DIM = 20
HID = 32

LANE = 128
DEFAULT_TM = 1024

# ---- fused mu/log-var head layout (rows of the head matmul result) ----------
HEAD_MU = 0          # rows 0:10  -> mu
HEAD_SIG = 16        # rows 16:26 -> log-variance (8-aligned start)
HEAD_OUT = 32        # padded head output rows

# ---- resident parameter slab layout (all row offsets 8-aligned) -------------
R_W1 = 0             # (32, 20) encoder weight        rows   0:32
R_WH = 32            # (32, 32) fused head weight     rows  32:64
R_WD1 = 64           # (32, 10) decoder weight 1      rows  64:96
R_WD3 = 96           # (20, 32) decoder weight 2      rows  96:116
W_ROWS = 120         # padded to a multiple of 8
W_COLS = HID         # 32 lanes

# ---- packed output slab layout (rows; all starts 8-aligned) -----------------
O_XR = 0             # rows  0:20  reconstruction
O_MU = 24            # rows 24:34  mu
O_SIG = 40           # rows 40:50  sig_sq
O_Z = 56             # rows 56:66  z
OUT_ROWS = 72


def _round_up(n, m):
    return ((n + m - 1) // m) * m


def _tile_plan(B, tm=DEFAULT_TM):
    """Return (B_pad, tm, steps) with tm a multiple of 128."""
    rb = _round_up(max(B, 1), LANE)
    tm = max(LANE, (min(tm, rb) // LANE) * LANE)
    steps = -(-rb // tm)
    # Prefer >=2 grid steps when the batch is large enough so that v7x's two
    # TensorCores (grid axis is "parallel") both get work; on 1-TC chips
    # (v5e/v6e) the extra step only costs ~0.35 us.
    if steps == 1 and rb >= 2 * LANE:
        tm = _round_up(rb // 2, LANE)
        steps = -(-rb // tm)
    return steps * tm, tm, steps


def padded_batch(B, tm=DEFAULT_TM):
    """Padded batch width the kernel will use; lets callers generate the
    feature-major eps array at this width so it is streamed with zero copies."""
    return _tile_plan(B, tm)[0]


def _vae_kernel(x_ref, eps_ref, wp_ref, bp_ref, out_ref):
    x_t = x_ref[...]        # (20, tm)  features on sublanes, batch on lanes
    eps_t = eps_ref[...]    # (10, tm)

    # Static slices of the two resident parameter slabs (free views).
    w1 = wp_ref[R_W1:R_W1 + HID, :IN_DIM]            # (32, 20)
    b1 = bp_ref[R_W1:R_W1 + HID, :]                  # (32, 1)
    wh = wp_ref[R_WH:R_WH + HEAD_OUT, :HID]          # (32, 32) fused mu/sig head
    bh = bp_ref[R_WH:R_WH + HEAD_OUT, :]             # (32, 1)
    wd1 = wp_ref[R_WD1:R_WD1 + HID, :LATENT]         # (32, 10)
    bd1 = bp_ref[R_WD1:R_WD1 + HID, :]               # (32, 1)
    wd3 = wp_ref[R_WD3:R_WD3 + IN_DIM, :HID]         # (20, 32)
    bd3 = bp_ref[R_WD3:R_WD3 + IN_DIM, :]            # (20, 1)

    # encoder: h = relu(W1 @ x + b1)                                 -> (32, tm)
    h = jnp.maximum(jnp.dot(w1, x_t, preferred_element_type=jnp.float32) + b1, 0.0)

    # fused mu / log-variance head (one matmul, 8-aligned row split) -> (32, tm)
    head = jnp.dot(wh, h, preferred_element_type=jnp.float32) + bh
    mu = head[HEAD_MU:HEAD_MU + LATENT, :]                           # (10, tm)
    sig_sq = jnp.exp(head[HEAD_SIG:HEAD_SIG + LATENT, :])            # (10, tm)

    # reparameterization: z = sqrt(sig_sq) * eps + mu  (exact torch math)
    z = jnp.sqrt(sig_sq) * eps_t + mu                                # (10, tm)

    # decoder: relu(Wd1 @ z + bd1), then Wd3 @ . + bd3               -> (20, tm)
    d = jnp.maximum(jnp.dot(wd1, z, preferred_element_type=jnp.float32) + bd1, 0.0)
    xr = jnp.dot(wd3, d, preferred_element_type=jnp.float32) + bd3

    # Lane-dense output slab; four 8-aligned sublane sub-slice stores.
    out_ref[O_XR:O_XR + IN_DIM, :] = xr
    out_ref[O_MU:O_MU + LATENT, :] = mu
    out_ref[O_SIG:O_SIG + LATENT, :] = sig_sq
    out_ref[O_Z:O_Z + LATENT, :] = z


def _pack_params(params):
    """Pack the 10 parameter tensors into one weight slab + one bias slab,
    with weights stored (out_features, in_features) for feature-major dots."""
    (w, b, wmu, bmu, wsig, bsig, wd1, bd1, wd3, bd3) = params
    wslab = jnp.zeros((W_ROWS, W_COLS), jnp.float32)
    bslab = jnp.zeros((W_ROWS, 1), jnp.float32)

    wslab = wslab.at[R_W1:R_W1 + HID, :IN_DIM].set(w.T)
    bslab = bslab.at[R_W1:R_W1 + HID, 0].set(b.reshape(-1))

    wslab = wslab.at[R_WH + HEAD_MU:R_WH + HEAD_MU + LATENT, :HID].set(wmu.T)
    bslab = bslab.at[R_WH + HEAD_MU:R_WH + HEAD_MU + LATENT, 0].set(bmu.reshape(-1))
    wslab = wslab.at[R_WH + HEAD_SIG:R_WH + HEAD_SIG + LATENT, :HID].set(wsig.T)
    bslab = bslab.at[R_WH + HEAD_SIG:R_WH + HEAD_SIG + LATENT, 0].set(bsig.reshape(-1))

    wslab = wslab.at[R_WD1:R_WD1 + HID, :LATENT].set(wd1.T)
    bslab = bslab.at[R_WD1:R_WD1 + HID, 0].set(bd1.reshape(-1))

    wslab = wslab.at[R_WD3:R_WD3 + IN_DIM, :HID].set(wd3.T)
    bslab = bslab.at[R_WD3:R_WD3 + IN_DIM, 0].set(bd3.reshape(-1))
    return wslab, bslab


def vae_simple_forward(x, eps_t, params, *, tm=DEFAULT_TM):
    """x: (B, 20) f32.  eps_t: (latent, N) standard normal, feature-major,
    ideally N == padded_batch(B) so it streams with zero wrapper copies.

    Returns (x_recon, mu, sig_sq, z), matching VAE_Simple.forward.
    """
    B = x.shape[0]
    B_pad, tm, steps = _tile_plan(B, tm)

    wslab, bslab = _pack_params(params)   # tiny (15 KiB); hoist if calling in a loop

    # Feature-major streamed x (one small transposed pad; eps needs none if the
    # caller generated it at the padded width).
    x_t = jnp.zeros((IN_DIM, B_pad), jnp.float32).at[:, :B].set(
        x.astype(jnp.float32).T)

    eps_t = eps_t.astype(jnp.float32)
    if eps_t.shape[1] != B_pad:
        n = min(eps_t.shape[1], B_pad)
        eps_t = jnp.zeros((LATENT, B_pad), jnp.float32).at[:, :n].set(eps_t[:, :n])

    out = pl.pallas_call(
        _vae_kernel,
        out_shape=jax.ShapeDtypeStruct((OUT_ROWS, B_pad), jnp.float32),
        grid=(steps,),
        in_specs=[
            pl.BlockSpec((IN_DIM, tm), lambda i: (0, i)),     # streamed x^T
            pl.BlockSpec((LATENT, tm), lambda i: (0, i)),     # streamed eps^T
            pl.BlockSpec((W_ROWS, W_COLS), lambda i: (0, 0)), # resident weights
            pl.BlockSpec((W_ROWS, 1), lambda i: (0, 0)),      # resident biases
        ],
        out_specs=pl.BlockSpec((OUT_ROWS, tm), lambda i: (0, i)),
        compiler_params=pltpu.CompilerParams(
            dimension_semantics=("parallel",)),
    )(x_t, eps_t, wslab, bslab)

    # Unpack to the torch-style batch-major API.  (If the consumer can take the
    # packed feature-major slab, return `out` directly and skip this pass.)
    xr = out[O_XR:O_XR + IN_DIM, :B].T
    mu = out[O_MU:O_MU + LATENT, :B].T
    sig_sq = out[O_SIG:O_SIG + LATENT, :B].T
    z = out[O_Z:O_Z + LATENT, :B].T
    return xr, mu, sig_sq, z


def init_params(key):
    """Deterministic init mimicking torch.nn.Linear default: U(-1/sqrt(fan_in), +)."""
    def linear(k, fan_in, fan_out):
        kw, kb = jax.random.split(k)
        bound = 1.0 / jnp.sqrt(fan_in)
        # stored (in, out), like x @ W
        wgt = jax.random.uniform(kw, (fan_in, fan_out), jnp.float32, -bound, bound)
        bias = jax.random.uniform(kb, (1, fan_out), jnp.float32, -bound, bound)
        return wgt, bias

    ks = jax.random.split(key, 5)
    w, b = linear(ks[0], IN_DIM, HID)        # self.w      : 20 -> 32
    wmu, bmu = linear(ks[1], HID, LATENT)    # self.w1mu   : 32 -> 10
    wsig, bsig = linear(ks[2], HID, LATENT)  # self.w1sig  : 32 -> 10
    wd1, bd1 = linear(ks[3], LATENT, HID)    # self.dw1    : 10 -> 32
    wd3, bd3 = linear(ks[4], HID, IN_DIM)    # self.dw3    : 32 -> 20
    return (w, b, wmu, bmu, wsig, bsig, wd1, bd1, wd3, bd3)


if __name__ == "__main__":
    key = jax.random.PRNGKey(0)
    k_params, k_x, k_eps = jax.random.split(key, 3)

    B = 8
    params = init_params(k_params)
    x = jax.random.normal(k_x, (B, IN_DIM), jnp.float32)

    # Generate eps feature-major at the padded batch width -> zero-copy stream.
    B_pad = padded_batch(B)
    eps_t = jax.random.normal(k_eps, (LATENT, B_pad), jnp.float32)

    xr, mu, sig_sq, z = jax.block_until_ready(vae_simple_forward(x, eps_t, params))

    # Pure-JAX reference check (same math, outside Pallas).
    (w, b, wmu, bmu, wsig, bsig, wd1, bd1, wd3, bd3) = params
    eps = eps_t[:, :B].T
    h = jnp.maximum(x @ w + b, 0.0)
    mu_r = h @ wmu + bmu
    sig_r = jnp.exp(h @ wsig + bsig)
    z_r = jnp.sqrt(sig_r) * eps + mu_r
    xr_r = jnp.maximum(z_r @ wd1 + bd1, 0.0) @ wd3 + bd3

    assert jnp.allclose(xr, xr_r, rtol=1e-4, atol=2e-5), "reconstruction mismatch"
    assert jnp.allclose(mu, mu_r, rtol=1e-4, atol=2e-5), "mu mismatch"
    assert jnp.allclose(sig_sq, sig_r, rtol=1e-4, atol=2e-5), "sig_sq mismatch"
    assert jnp.allclose(z, z_r, rtol=1e-4, atol=2e-5), "z mismatch"

    print("KERNEL_OK")
</pallas_src>

<mosaic_0001>
module attributes {stable_mosaic.version = 11 : i64} {
  func.func @_vae_kernel(%arg0: i32, %arg1: memref<20x128xf32, #tpu.memory_space<vmem>>, %arg2: memref<10x128xf32, #tpu.memory_space<vmem>>, %arg3: memref<120x32xf32, #tpu.memory_space<vmem>>, %arg4: memref<120x1xf32, #tpu.memory_space<vmem>>, %arg5: memref<72x128xf32, #tpu.memory_space<vmem>>) attributes {dimension_semantics = [#tpu.dimension_semantics<parallel>], iteration_bounds = array<i64: 1>, scalar_prefetch = 0 : i64, scratch_operands = 0 : i64, tpu.core_type = #tpu.core_type<tc>, window_params = [{transform_indices = @transform_0, window_bounds = array<i64: 20, 128>}, {transform_indices = @transform_1, window_bounds = array<i64: 10, 128>}, {pipeline_mode = #tpu.pipeline_mode<synchronous>, transform_indices = @transform_2, window_bounds = array<i64: 120, 32>}, {pipeline_mode = #tpu.pipeline_mode<synchronous>, transform_indices = @transform_3, window_bounds = array<i64: 120, 1>}, {transform_indices = @transform_4, window_bounds = array<i64: 72, 128>}]} {
    %c0 = arith.constant 0 : index
    %c0_0 = arith.constant 0 : index
    %0 = vector.load %arg1[%c0, %c0_0] : memref<20x128xf32, #tpu.memory_space<vmem>>, vector<20x128xf32>
    %c0_1 = arith.constant 0 : index
    %c0_2 = arith.constant 0 : index
    %1 = vector.load %arg2[%c0_1, %c0_2] : memref<10x128xf32, #tpu.memory_space<vmem>>, vector<10x128xf32>
    %c0_3 = arith.constant 0 : index
    %c0_4 = arith.constant 0 : index
    %2 = vector.load %arg3[%c0_3, %c0_4] : memref<120x32xf32, #tpu.memory_space<vmem>>, vector<32x20xf32>
    %c0_5 = arith.constant 0 : index
    %c0_6 = arith.constant 0 : index
    %3 = vector.load %arg4[%c0_5, %c0_6] : memref<120x1xf32, #tpu.memory_space<vmem>>, vector<32x1xf32>
    %c32 = arith.constant 32 : index
    %c0_7 = arith.constant 0 : index
    %4 = vector.load %arg3[%c32, %c0_7] : memref<120x32xf32, #tpu.memory_space<vmem>>, vector<32x32xf32>
    %c32_8 = arith.constant 32 : index
    %c0_9 = arith.constant 0 : index
    %5 = vector.load %arg4[%c32_8, %c0_9] : memref<120x1xf32, #tpu.memory_space<vmem>>, vector<32x1xf32>
    %c64 = arith.constant 64 : index
    %c0_10 = arith.constant 0 : index
    %6 = vector.load %arg3[%c64, %c0_10] : memref<120x32xf32, #tpu.memory_space<vmem>>, vector<32x10xf32>
    %c64_11 = arith.constant 64 : index
    %c0_12 = arith.constant 0 : index
    %7 = vector.load %arg4[%c64_11, %c0_12] : memref<120x1xf32, #tpu.memory_space<vmem>>, vector<32x1xf32>
    %c96 = arith.constant 96 : index
    %c0_13 = arith.constant 0 : index
    %8 = vector.load %arg3[%c96, %c0_13] : memref<120x32xf32, #tpu.memory_space<vmem>>, vector<20x32xf32>
    %c96_14 = arith.constant 96 : index
    %c0_15 = arith.constant 0 : index
    %9 = vector.load %arg4[%c96_14, %c0_15] : memref<120x1xf32, #tpu.memory_space<vmem>>, vector<20x1xf32>
    %cst = arith.constant dense<0.000000e+00> : vector<32x128xf32>
    %10 = tpu.matmul %2, %0, %cst {dimension_numbers = #tpu.dot_dimension_numbers<[1], [0], [0], [1], [0, 0, 1, 1], [], []>} : vector<32x20xf32>, vector<20x128xf32>, vector<32x128xf32> -> vector<32x128xf32>
    %11 = vector.broadcast %3 : vector<32x1xf32> to vector<32x128xf32>
    %12 = arith.addf %10, %11 : vector<32x128xf32>
    %cst_16 = arith.constant 0.000000e+00 : f32
    %13 = vector.broadcast %cst_16 : f32 to vector<32x128xf32>
    %14 = arith.maximumf %12, %13 : vector<32x128xf32>
    %cst_17 = arith.constant dense<0.000000e+00> : vector<32x128xf32>
    %15 = tpu.matmul %4, %14, %cst_17 {dimension_numbers = #tpu.dot_dimension_numbers<[1], [0], [0], [1], [0, 0, 1, 1], [], []>} : vector<32x32xf32>, vector<32x128xf32>, vector<32x128xf32> -> vector<32x128xf32>
    %16 = vector.broadcast %5 : vector<32x1xf32> to vector<32x128xf32>
    %17 = arith.addf %15, %16 : vector<32x128xf32>
    %18 = vector.extract_strided_slice %17 {offsets = [0, 0], sizes = [10, 128], strides = [1, 1]} : vector<32x128xf32> to vector<10x128xf32>
    %19 = vector.extract_strided_slice %17 {offsets = [16, 0], sizes = [10, 128], strides = [1, 1]} : vector<32x128xf32> to vector<10x128xf32>
    %20 = math.exp %19 : vector<10x128xf32>
    %21 = math.sqrt %20 : vector<10x128xf32>
    %22 = arith.mulf %21, %1 : vector<10x128xf32>
    %23 = arith.addf %22, %18 : vector<10x128xf32>
    %cst_18 = arith.constant dense<0.000000e+00> : vector<32x128xf32>
    %24 = tpu.matmul %6, %23, %cst_18 {dimension_numbers = #tpu.dot_dimension_numbers<[1], [0], [0], [1], [0, 0, 1, 1], [], []>} : vector<32x10xf32>, vector<10x128xf32>, vector<32x128xf32> -> vector<32x128xf32>
    %25 = vector.broadcast %7 : vector<32x1xf32> to vector<32x128xf32>
    %26 = arith.addf %24, %25 : vector<32x128xf32>
    %cst_19 = arith.constant 0.000000e+00 : f32
    %27 = vector.broadcast %cst_19 : f32 to vector<32x128xf32>
    %28 = arith.maximumf %26, %27 : vector<32x128xf32>
    %cst_20 = arith.constant dense<0.000000e+00> : vector<20x128xf32>
    %29 = tpu.matmul %8, %28, %cst_20 {dimension_numbers = #tpu.dot_dimension_numbers<[1], [0], [0], [1], [0, 0, 1, 1], [], []>} : vector<20x32xf32>, vector<32x128xf32>, vector<20x128xf32> -> vector<20x128xf32>
    %30 = vector.broadcast %9 : vector<20x1xf32> to vector<20x128xf32>
    %31 = arith.addf %29, %30 : vector<20x128xf32>
    %c0_21 = arith.constant 0 : index
    %c0_22 = arith.constant 0 : index
    %32 = vector.load %arg5[%c0_21, %c0_22] : memref<72x128xf32, #tpu.memory_space<vmem>>, vector<20x128xf32>
    tpu.vector_store %arg5[%c0_21, %c0_22], %31 {strides = array<i32>} : memref<72x128xf32, #tpu.memory_space<vmem>>, vector<20x128xf32>,
    %c24 = arith.constant 24 : index
    %c0_23 = arith.constant 0 : index
    %33 = vector.load %arg5[%c24, %c0_23] : memref<72x128xf32, #tpu.memory_space<vmem>>, vector<10x128xf32>
    tpu.vector_store %arg5[%c24, %c0_23], %18 {strides = array<i32>} : memref<72x128xf32, #tpu.memory_space<vmem>>, vector<10x128xf32>,
    %c40 = arith.constant 40 : index
    %c0_24 = arith.constant 0 : index
    %34 = vector.load %arg5[%c40, %c0_24] : memref<72x128xf32, #tpu.memory_space<vmem>>, vector<10x128xf32>
    tpu.vector_store %arg5[%c40, %c0_24], %20 {strides = array<i32>} : memref<72x128xf32, #tpu.memory_space<vmem>>, vector<10x128xf32>,
    %c56 = arith.constant 56 : index
    %c0_25 = arith.constant 0 : index
    %35 = vector.load %arg5[%c56, %c0_25] : memref<72x128xf32, #tpu.memory_space<vmem>>, vector<10x128xf32>
    tpu.vector_store %arg5[%c56, %c0_25], %23 {strides = array<i32>} : memref<72x128xf32, #tpu.memory_space<vmem>>, vector<10x128xf32>,
    return
  }
  func.func @transform_0(%arg0: i32) -> (i32, i32) {
    %c0_i32 = arith.constant 0 : i32
    %c0_i32_0 = arith.constant 0 : i32
    return %c0_i32, %arg0 : i32, i32
  }
  func.func @transform_1(%arg0: i32) -> (i32, i32) {
    %c0_i32 = arith.constant 0 : i32
    %c0_i32_0 = arith.constant 0 : i32
    return %c0_i32, %arg0 : i32, i32
  }
  func.func @transform_2(%arg0: i32) -> (i32, i32) {
    %c0_i32 = arith.constant 0 : i32
    %c0_i32_0 = arith.constant 0 : i32
    %c0_i32_1 = arith.constant 0 : i32
    return %c0_i32, %c0_i32_0 : i32, i32
  }
  func.func @transform_3(%arg0: i32) -> (i32, i32) {
    %c0_i32 = arith.constant 0 : i32
    %c0_i32_0 = arith.constant 0 : i32
    %c0_i32_1 = arith.constant 0 : i32
    return %c0_i32, %c0_i32_0 : i32, i32
  }
  func.func @transform_4(%arg0: i32) -> (i32, i32) {
    %c0_i32 = arith.constant 0 : i32
    %c0_i32_0 = arith.constant 0 : i32
    return %c0_i32, %arg0 : i32, i32
  }
}

</mosaic_0001>

<llo_original>
// kernel: tpu_custom_call.1
$region0: #{tpu_custom_call.1}
  #allocation0 [shape = 'u32[]', space=smem, size = 0x4, offset = 0x4, fixed_abs, tag = 'smem constant byte address 0x4 - core index']
  #allocation1 [shape = 'u32[72,128]{1,0:T(1,128)}', space=vmem, size = 0x9000, scoped, tag = 'internal scratch']
  %s0 = inlined_call_operand.vmem [shape: f32[20,128], index: 0, kind: input, shape index: {}]
  %s1 = inlined_call_operand.vmem [shape: f32[10,128], index: 1, kind: input, shape index: {}]
  %s2 = inlined_call_operand.vmem [shape: f32[120,32], index: 2, kind: input, shape index: {}]
  %s3 = inlined_call_operand.vmem [shape: f32[120,1], index: 3, kind: input, shape index: {}]
  %s4 = inlined_call_operand.hbm [shape: f32[72,128], index: 4, kind: output, shape index: {}]
  %s5 = sld [smem:[#allocation0]]
  $region26: #{tpu_custom_call.1} parent=0
    _
  %s7 = ssub.s32 1, %s5
  %s8 = scalar_select 0, %s7, %s5
  $region1: #{tpu_custom_call.1} parent=0
    #allocation2 [shape = 'u8[36864]{0}', space=vmem, size = 0x9000, scoped, tag = 'output window, operand 0, single buffered']
    #allocation3 [shape = 's32[1]{0}', space=sflag, size = 0x4, scoped, tag = 'scoped memory for tpu_custom_call.1']
    %9 = vsyncpa [#allocation3], 0
    // Predicated region
    $region2: #{tpu_custom_call.1} parent=1 // pred_check
      _
    $region3: #{tpu_custom_call.1} parent=1 // pred_check_branch
      %11 = sbr.rel (0) target = $region5
    $region4: #{tpu_custom_call.1} parent=1 // pred_region
      _
    $region5: #{tpu_custom_call.1} parent=1 // pred_fallthru
      _
    // Predicated region
    $region6: #{tpu_custom_call.1} parent=1 // pred_check
      _
    $region7: #{tpu_custom_call.1} parent=1 // pred_check_branch
      %13 = sbr.rel (0) target = $region9
    $region8: #{tpu_custom_call.1} parent=1 // pred_region
      _
    $region9: #{tpu_custom_call.1} parent=1 // pred_fallthru
      _
    // Predicated region
    $region10: #{tpu_custom_call.1} parent=1 // pred_check
      _
    $region11: #{tpu_custom_call.1} parent=1 // pred_check_branch
      %15 = sbr.rel (0) target = $region13
    $region12: #{tpu_custom_call.1} parent=1 // pred_region
      _
    $region13: #{tpu_custom_call.1} parent=1 // pred_fallthru
      _
    // Predicated region
    $region14: #{tpu_custom_call.1} parent=1 // pred_check
      _
    $region15: #{tpu_custom_call.1} parent=1 // pred_check_branch
      %17 = sbr.rel (0) target = $region17
    $region16: #{tpu_custom_call.1} parent=1 // pred_region
      _
    $region17: #{tpu_custom_call.1} parent=1 // pred_fallthru
      _
    %v18 = vld [vmem:[%s0] sm:$0xff]
    %v19 = vld [vmem:[%s0 + $0x8] sm:$0xff]
    %v20 = vld [vmem:[%s0 + $0x10] sm:$0xf]
    %v21 = vld [vmem:[%s1] sm:$0xff]
    %v22 = vld [vmem:[%s1 + $0x8] sm:$0x3]
    %v23 = vld [vmem:[%s2] sm:$0xff]
    %v24 = vld [vmem:[%s2 + $0x8] sm:$0xff]
    %v25 = vld [vmem:[%s2 + $0x10] sm:$0xff]
    %v26 = vld [vmem:[%s2 + $0x18] sm:$0xff]
    %v27 = vld [vmem:[%s3] sm:$0xff]
    %v28 = vld [vmem:[%s3 + $0x8] sm:$0xff]
    %v29 = vld [vmem:[%s3 + $0x10] sm:$0xff]
    %v30 = vld [vmem:[%s3 + $0x18] sm:$0xff]
    %v31 = vld [vmem:[%s2 + $0x20] sm:$0xff]
    %v32 = vld [vmem:[%s2 + $0x28] sm:$0xff]
    %v33 = vld [vmem:[%s2 + $0x30] sm:$0xff]
    %v34 = vld [vmem:[%s2 + $0x38] sm:$0xff]
    %v35 = vld [vmem:[%s3 + $0x20] sm:$0xff]
    %v36 = vld [vmem:[%s3 + $0x28] sm:$0xff]
    %v37 = vld [vmem:[%s3 + $0x30] sm:$0xff]
    %v38 = vld [vmem:[%s3 + $0x38] sm:$0xff]
    %v39 = vld [vmem:[%s2 + $0x40] sm:$0xff]
    %v40 = vld [vmem:[%s2 + $0x48] sm:$0xff]
    %v41 = vld [vmem:[%s2 + $0x50] sm:$0xff]
    %v42 = vld [vmem:[%s2 + $0x58] sm:$0xff]
    %v43 = vld [vmem:[%s3 + $0x40] sm:$0xff]
    %v44 = vld [vmem:[%s3 + $0x48] sm:$0xff]
    %v45 = vld [vmem:[%s3 + $0x50] sm:$0xff]
    %v46 = vld [vmem:[%s3 + $0x58] sm:$0xff]
    %v47 = vld [vmem:[%s2 + $0x60] sm:$0xff]
    %v48 = vld [vmem:[%s2 + $0x68] sm:$0xff]
    %v49 = vld [vmem:[%s2 + $0x70] sm:$0xf]
    %v50 = vld [vmem:[%s3 + $0x60] sm:$0xff]
    %v51 = vld [vmem:[%s3 + $0x68] sm:$0xff]
    %v52 = vld [vmem:[%s3 + $0x70] sm:$0xf]
    %54 = vset.pattern.permute.xlu0 0
    %55 = vperm.xlu0 %54, %v27
    %v56 = vpop.permute.xlu0 %55
    %59 = vset.pattern.permute.xlu0 0
    %60 = vperm.xlu0 %59, %v28
    %v61 = vpop.permute.xlu0 %60
    %64 = vset.pattern.permute.xlu0 0
    %65 = vperm.xlu0 %64, %v29
    %v66 = vpop.permute.xlu0 %65
    %69 = vset.pattern.permute.xlu0 0
    %70 = vperm.xlu0 %69, %v30
    %v71 = vpop.permute.xlu0 %70
    %vm73 = vcmask 162816
    %v75 = vsel %vm73, %v23, 0
    %v78 = vsel %vm73, %v24, 0
    %v81 = vsel %vm73, %v25, 0
    %v84 = vsel %vm73, %v26, 0
    %vm86 = vcmask 1043456
    %v88 = vsel %vm86, %v20, 0
    %90 = vmatpush.msra.mxu0 0.0
    %91 = vmatpush.msra.mxu0 0.0
    %92 = vmatpush.msra.mxu0 0.0
    %93 = vmatpush.msra.mxu0 0.0
    %94 = vmatpush.msra.mxu0 0.0
    %95 = vmatpush.msra.mxu0 0.0
    %96 = vmatpush.msra.mxu0 0.0
    %97 = vmatpush.msra.mxu0 0.0
    %98 = vmatpush.msra.mxu0 0.0
    %99 = vmatpush.msra.mxu0 0.0
    %100 = vmatpush.msra.mxu0 0.0
    %101 = vmatpush.msra.mxu0 0.0
    %102 = vmatpush.msra.mxu0 0.0
    %103 = vmatpush.msra.mxu0 %v88
    %104 = vmatpush.msra.mxu0 %v19
    %105 = vmatpush.msra.mxu0 %v18
    %106 = vmatmul.f32.gmra.mxu0 %v75
    %v107 = vpop.f32.mrf.mxu0
    %v108 = vadd.f32 %v56, %v107
    %109 = vmatmul.f32.gmra.mxu0 %v78
    %v110 = vpop.f32.mrf.mxu0
    %v111 = vadd.f32 %v61, %v110
    %112 = vmatmul.f32.gmra.mxu0 %v81
    %v113 = vpop.f32.mrf.mxu0
    %v114 = vadd.f32 %v66, %v113
    %115 = vmatmul.f32.gmra.mxu0 %v84
    %v116 = vpop.f32.mrf.mxu0
    %v117 = vadd.f32 %v71, %v116
    %118 = vdwg.mxu0
    %v119 = vmax.f32 %v108, 0.0
    %v120 = vmax.f32 %v111, 0.0
    %v121 = vmax.f32 %v114, 0.0
    %v122 = vmax.f32 %v117, 0.0
    %124 = vset.pattern.permute.xlu0 0
    %125 = vperm.xlu0 %124, %v35
    %v126 = vpop.permute.xlu0 %125
    %129 = vset.pattern.permute.xlu0 0
    %130 = vperm.xlu0 %129, %v36
    %v131 = vpop.permute.xlu0 %130
    %134 = vset.pattern.permute.xlu0 0
    %135 = vperm.xlu0 %134, %v37
    %v136 = vpop.permute.xlu0 %135
    %139 = vset.pattern.permute.xlu0 0
    %140 = vperm.xlu0 %139, %v38
    %v141 = vpop.permute.xlu0 %140
    %vm143 = vcmask 261120
    %v145 = vsel %vm143, %v31, 0
    %v148 = vsel %vm143, %v32, 0
    %v151 = vsel %vm143, %v33, 0
    %v154 = vsel %vm143, %v34, 0
    %156 = vmatpush.msra.mxu0 0.0
    %157 = vmatpush.msra.mxu0 0.0
    %158 = vmatpush.msra.mxu0 0.0
    %159 = vmatpush.msra.mxu0 0.0
    %160 = vmatpush.msra.mxu0 0.0
    %161 = vmatpush.msra.mxu0 0.0
    %162 = vmatpush.msra.mxu0 0.0
    %163 = vmatpush.msra.mxu0 0.0
    %164 = vmatpush.msra.mxu0 0.0
    %165 = vmatpush.msra.mxu0 0.0
    %166 = vmatpush.msra.mxu0 0.0
    %167 = vmatpush.msra.mxu0 0.0
    %168 = vmatpush.msra.mxu0 %v122
    %169 = vmatpush.msra.mxu0 %v121
    %170 = vmatpush.msra.mxu0 %v120
    %171 = vmatpush.msra.mxu0 %v119
    %172 = vmatmul.f32.gmra.mxu0 %v145
    %v173 = vpop.f32.mrf.mxu0
    %v174 = vadd.f32 %v126, %v173
    %175 = vmatmul.f32.gmra.mxu0 %v148
    %v176 = vpop.f32.mrf.mxu0
    %v177 = vadd.f32 %v131, %v176
    %178 = vmatmul.f32.gmra.mxu0 %v151
    %v179 = vpop.f32.mrf.mxu0
    %v180 = vadd.f32 %v136, %v179
    %181 = vmatmul.f32.gmra.mxu0 %v154
    %v182 = vpop.f32.mrf.mxu0
    %v183 = vadd.f32 %v141, %v182
    %184 = vdwg.mxu0
    %v185 = vmul.f32 %v180, 1.442695
    %v186 = vpow.pop %v185
    %v187 = vmul.f32 %v183, 1.442695
    %v188 = vpow.pop %v187
    %v189 = vrsqrt.pop %v186
    %v190 = vmul.f32 %v189, %v186
    %v191 = vmul.f32 %v190, %v189
    %v192 = vmul.f32 0.5, %v191
    %v193 = vsub.f32 1.5, %v192
    %v194 = vmul.f32 %v189, %v193
    %v195 = vmul.f32 %v186, %v194
    %vm196 = vcmp.eq.f32.partialorder %v186, inf
    %v197 = vsel %vm196, %v186, %v195
    %vm198 = vcmp.eq.f32.partialorder %v186, 0.0
    %v199 = vand.u32 %v186, 2147483648
    %v200 = vsel %vm198, %v199, %v197
    %v201 = vrsqrt.pop %v188
    %v202 = vmul.f32 %v201, %v188
    %v203 = vmul.f32 %v202, %v201
    %v204 = vmul.f32 0.5, %v203
    %v205 = vsub.f32 1.5, %v204
    %v206 = vmul.f32 %v201, %v205
    %v207 = vmul.f32 %v188, %v206
    %vm208 = vcmp.eq.f32.partialorder %v188, inf
    %v209 = vsel %vm208, %v188, %v207
    %vm210 = vcmp.eq.f32.partialorder %v188, 0.0
    %v211 = vand.u32 %v188, 2147483648
    %v212 = vsel %vm210, %v211, %v209
    %v213 = vmul.f32 %v200, %v21
    %v214 = vmul.f32 %v212, %v22
    %v215 = vadd.f32 %v213, %v174
    %v216 = vadd.f32 %v214, %v177
    %218 = vset.pattern.permute.xlu0 0
    %219 = vperm.xlu0 %218, %v43
    %v220 = vpop.permute.xlu0 %219
    %223 = vset.pattern.permute.xlu0 0
    %224 = vperm.xlu0 %223, %v44
    %v225 = vpop.permute.xlu0 %224
    %228 = vset.pattern.permute.xlu0 0
    %229 = vperm.xlu0 %228, %v45
    %v230 = vpop.permute.xlu0 %229
    %233 = vset.pattern.permute.xlu0 0
    %234 = vperm.xlu0 %233, %v46
    %v235 = vpop.permute.xlu0 %234
    %vm237 = vcmask 80896
    %v239 = vsel %vm237, %v39, 0
    %v242 = vsel %vm237, %v40, 0
    %v245 = vsel %vm237, %v41, 0
    %v248 = vsel %vm237, %v42, 0
    %vm250 = vcmask 1041408
    %v252 = vsel %vm250, %v216, 0
    %254 = vmatpush.msra.mxu0 0.0
    %255 = vmatpush.msra.mxu0 0.0
    %256 = vmatpush.msra.mxu0 0.0
    %257 = vmatpush.msra.mxu0 0.0
    %258 = vmatpush.msra.mxu0 0.0
    %259 = vmatpush.msra.mxu0 0.0
    %260 = vmatpush.msra.mxu0 0.0
    %261 = vmatpush.msra.mxu0 0.0
    %262 = vmatpush.msra.mxu0 0.0
    %263 = vmatpush.msra.mxu0 0.0
    %264 = vmatpush.msra.mxu0 0.0
    %265 = vmatpush.msra.mxu0 0.0
    %266 = vmatpush.msra.mxu0 0.0
    %267 = vmatpush.msra.mxu0 0.0
    %268 = vmatpush.msra.mxu0 %v252
    %269 = vmatpush.msra.mxu0 %v215
    %270 = vmatmul.f32.gmra.mxu0 %v239
    %v271 = vpop.f32.mrf.mxu0
    %v272 = vadd.f32 %v220, %v271
    %273 = vmatmul.f32.gmra.mxu0 %v242
    %v274 = vpop.f32.mrf.mxu0
    %v275 = vadd.f32 %v225, %v274
    %276 = vmatmul.f32.gmra.mxu0 %v245
    %v277 = vpop.f32.mrf.mxu0
    %v278 = vadd.f32 %v230, %v277
    %279 = vmatmul.f32.gmra.mxu0 %v248
    %v280 = vpop.f32.mrf.mxu0
    %v281 = vadd.f32 %v235, %v280
    %282 = vdwg.mxu0
    %v283 = vmax.f32 %v272, 0.0
    %v284 = vmax.f32 %v275, 0.0
    %v285 = vmax.f32 %v278, 0.0
    %v286 = vmax.f32 %v281, 0.0
    %288 = vset.pattern.permute.xlu0 0
    %289 = vperm.xlu0 %288, %v50
    %v290 = vpop.permute.xlu0 %289
    %293 = vset.pattern.permute.xlu0 0
    %294 = vperm.xlu0 %293, %v51
    %v295 = vpop.permute.xlu0 %294
    %298 = vset.pattern.permute.xlu0 0
    %299 = vperm.xlu0 %298, %v52
    %v300 = vpop.permute.xlu0 %299
    %v303 = vsel %vm143, %v47, 0
    %v306 = vsel %vm143, %v48, 0
    %v309 = vsel %vm143, %v49, 0
    %311 = vmatpush.msra.mxu0 0.0
    %312 = vmatpush.msra.mxu0 0.0
    %313 = vmatpush.msra.mxu0 0.0
    %314 = vmatpush.msra.mxu0 0.0
    %315 = vmatpush.msra.mxu0 0.0
    %316 = vmatpush.msra.mxu0 0.0
    %317 = vmatpush.msra.mxu0 0.0
    %318 = vmatpush.msra.mxu0 0.0
    %319 = vmatpush.msra.mxu0 0.0
    %320 = vmatpush.msra.mxu0 0.0
    %321 = vmatpush.msra.mxu0 0.0
    %322 = vmatpush.msra.mxu0 0.0
    %323 = vmatpush.msra.mxu0 %v286
    %324 = vmatpush.msra.mxu0 %v285
    %325 = vmatpush.msra.mxu0 %v284
    %326 = vmatpush.msra.mxu0 %v283
    %327 = vmatmul.f32.gmra.mxu0 %v303
    %v328 = vpop.f32.mrf.mxu0
    %v329 = vadd.f32 %v290, %v328
    %330 = vmatmul.f32.gmra.mxu0 %v306
    %v331 = vpop.f32.mrf.mxu0
    %v332 = vadd.f32 %v295, %v331
    %333 = vmatmul.f32.gmra.mxu0 %v309
    %v334 = vpop.f32.mrf.mxu0
    %v335 = vadd.f32 %v300, %v334
    %336 = vdwg.mxu0
    %337 = vst [vmem:[#allocation2] sm:$0xff] %v329
    %338 = vst [vmem:[#allocation2 + $0x8] sm:$0xff] %v332
    %339 = vst [vmem:[#allocation2 + $0x10] sm:$0xf] %v335
    %340 = vst [vmem:[#allocation2 + $0x18] sm:$0xff] %v174
    %341 = vst [vmem:[#allocation2 + $0x20] sm:$0x3] %v177
    %342 = vst [vmem:[#allocation2 + $0x28] sm:$0xff] %v186
    %343 = vst [vmem:[#allocation2 + $0x30] sm:$0x3] %v188
    %344 = vst [vmem:[#allocation2 + $0x38] sm:$0xff] %v215
    %345 = vst [vmem:[#allocation2 + $0x40] sm:$0x3] %v216
    // Predicated region
    $region18: #{tpu_custom_call.1} parent=1 // pred_check
      _
    $region19: #{tpu_custom_call.1} parent=1 // pred_check_branch
      %347 = sbr.rel (0) target = $region21
    $region20: #{tpu_custom_call.1} parent=1 // pred_region
      %349 = vsyncadd [#allocation3], 0
      %s350 = sshll.u32 [#allocation2], 4
      %s351 = int_to_ptr.vmem [resolvable:$true] %s350
      %s352 = sshll.u32 %s4, 4
      %s353 = int_to_ptr.hbm [resolvable:$true] %s352
      %358 = dma.vmem_to_hbm [thread:$0]  %s351, 1152, %s353, [#allocation3], 128, 128, 8
    $region21: #{tpu_custom_call.1} parent=1 // pred_fallthru
      _
    // Predicated region
    $region22: #{tpu_custom_call.1} parent=1 // pred_check
      _
    $region23: #{tpu_custom_call.1} parent=1 // pred_check_branch
      %360 = sbr.rel (0) target = $region25
    $region24: #{tpu_custom_call.1} parent=1 // pred_region
      %362 = dma.done [#allocation3], 1152
    $region25: #{tpu_custom_call.1} parent=1 // pred_fallthru
      _
    %363 = vsyncpa [#allocation3], 1

</llo_original>
